<compile_context>
chip_gen: v6e
topology: v6e:2x2x1
jax: 0.10.0
libtpu: 0.0.40
codegen_flags: <defaults>
</compile_context>

<pallas_src>
import functools

import jax
import jax.numpy as jnp
from jax import lax
from jax.experimental import pallas as pl
from jax.experimental.pallas import tpu as pltpu

# ----------------------------- model dims ----------------------------------
B, S, H = 2, 8, 32          # batch, sequence length, hidden_size
E, VOCAB = 32, 64           # embedding_dim, vocab_size (stub assumes E == H)
BS = B * S
PACK_W = 128                # lane width of activation / output / weight slabs

# ---- weight-slab row bands (all start at a multiple of 16 rows, lane 0) ----
KA, OA = 80, 48             # band A rows [  0, 80): fused embedding+encoder
RB, KB, OB = 80, 48, 80     # band B rows [ 80,128): [w_rep | p_w1]
RC, KC, OC = 128, 80, 48    # band C rows [128,208): v_w1
RD, KD, OD = 208, 48, 8     # band D rows [208,256): fused [p_w2 | v_w2] heads
RSLAB = 256

# ---- packed-output column layout (single lane-dense (BS,128) output slab) --
OFF_SPARSE = 0              # [0, H)       per-token gated pooled vector
OFF_LOGITS = H              # [H, H+2)     policy logits
OFF_LOGP = H + 2            # [H+2, H+4)   log_softmax(logits)
OFF_POLICY = H + 4          # [H+4, H+6)   hard one-hot policy
OFF_VALUE = H + 6           # [H+6, H+7)   value (broadcast to every token)


# ------------------------------ kernel --------------------------------------
def _rl_fused_kernel(act_ref, w_ref, out_ref):
    f32, bf16 = jnp.float32, jnp.bfloat16

    # ---- activation slab lanes: [token_id, mask, g0, g1, 0...] ----
    tok = act_ref[:, 0:1]                           # (BS, 1) token id as f32
    msk = act_ref[:, 1:2]                           # (BS, 1) attention mask
    g = act_ref[:, 2:4]                             # (BS, 2) gumbel noise

    # ---- lane-0-aligned, 16-row-aligned weight bands (bf16) ----
    wA = w_ref[0:KA, 0:OA]                          # (80, 48)
    wB = w_ref[RB:RB + KB, 0:OB]                    # (48, 80)
    wC = w_ref[RC:RC + KC, 0:OC]                    # (80, 48)
    wD = w_ref[RD:RD + KD, 0:OD]                    # (48, 8)

    # ---- band A: fused embedding lookup + encoder tanh projection ----
    # TODO(synk): real SparseEncoder is a pretrained HF transformer; stubbed as
    # embedding lookup + tanh projection + mask gate, all fused into one matmul.
    # one-hot(token) plus an extra "1" at column VOCAB folds b_enc into the MXU.
    colA = lax.broadcasted_iota(jnp.int32, (BS, KA), 1).astype(f32)
    onehot = jnp.where(
        jnp.logical_or(colA == tok, colA == float(VOCAB)), 1.0, 0.0).astype(bf16)
    zA = jnp.dot(onehot, wA, preferred_element_type=f32)            # (BS, 48)
    colH = lax.broadcasted_iota(jnp.int32, (BS, OA), 1)
    # lanes [0,H): tanh(emb @ w_enc + b_enc) * mask ; lane H: carry-one feature
    h_aug = jnp.where(colH == H, 1.0, jnp.tanh(zA) * msk)           # (BS, 48)

    # ---- band B: fused [SPLADE rep | policy hidden], biases as row H ----
    rp = jnp.maximum(
        jnp.dot(h_aug.astype(bf16), wB, preferred_element_type=f32), 0.0)  # (BS, 80)
    ph_aug = rp[:, H:H + KD]        # [policy hidden | carry-one | 0...]  (BS, 48)

    # ---- pooled = max over the sequence (carry-one lane survives the max) ----
    pooled = jnp.max(rp.reshape(B, S, OB), axis=1)                  # (B, 80)

    # ---- band C: value hidden (v_b1 folded via pooled's carry-one lane) ----
    vh_aug = jnp.maximum(
        jnp.dot(pooled.astype(bf16), wC, preferred_element_type=f32), 0.0)  # (B, 48)

    # ---- band D: fused policy/value heads, ONE MXU push ----
    head_lhs = jnp.concatenate([ph_aug, vh_aug], axis=0).astype(bf16)   # (BS+B, 48)
    hd = jnp.dot(head_lhs, wD, preferred_element_type=f32)              # (BS+B, 8)
    logits = hd[0:BS, 0:2]                                              # (BS, 2)
    value = hd[BS:BS + B, 2:3]                                          # (B, 1)

    # ---- log_probs = log_softmax(logits) ----
    m = jnp.max(logits, axis=-1, keepdims=True)
    z = logits - m
    logp = z - jnp.log(jnp.sum(jnp.exp(z), axis=-1, keepdims=True))

    # ---- hard Gumbel-softmax forward == argmax(logits + gumbel) ----
    # softmax / temperature>0 are monotone, so the hard one-hot is identical.
    # TODO(synk): straight-through (soft) backward of gumbel_softmax not implemented.
    y = logits + g
    sel = (y[:, 1:2] > y[:, 0:1]).astype(f32)                       # (BS, 1)
    col2 = lax.broadcasted_iota(jnp.int32, (BS, 2), 1)
    policy = jnp.where(col2 == 1, sel, 1.0 - sel)                   # (BS, 2)

    # ---- sparse_repr gating ----
    # TODO(synk): original PyTorch broadcast (B,H)*(B,S,1) is only well-formed
    # when B == S; implemented here as per-(batch, token) gating of pooled.
    pooled_tok = jnp.broadcast_to(
        pooled[:, None, 0:H], (B, S, H)).reshape(BS, H)             # (BS, H)
    sparse = pooled_tok * sel
    value_tok = jnp.broadcast_to(value[:, None, :], (B, S, 1)).reshape(BS, 1)

    # ---- packed lane-dense output: direct sub-slice stores (no concat/pad) ----
    out_ref[...] = jnp.zeros((BS, PACK_W), f32)   # keep unread pad lanes deterministic
    out_ref[:, OFF_SPARSE:OFF_SPARSE + H] = sparse
    out_ref[:, OFF_LOGITS:OFF_LOGITS + 2] = logits
    out_ref[:, OFF_LOGP:OFF_LOGP + 2] = logp
    out_ref[:, OFF_POLICY:OFF_POLICY + 2] = policy
    out_ref[:, OFF_VALUE:OFF_VALUE + 1] = value_tok


# ------------------------------ wrapper --------------------------------------
@functools.partial(jax.jit, static_argnames=("temperature",))
def sparse_retrieval_rl_forward(q_tokens, q_masks, wslab, gumbel_key,
                                temperature=1.0):
    # temperature only affects the straight-through backward of the hard
    # Gumbel-softmax; the forward one-hot / log_probs are temperature-free.
    del temperature

    # pre-sampled Gumbel noise (kept in the wrapper to preserve jax.random parity)
    g = jax.random.gumbel(gumbel_key, (BS, 2), dtype=jnp.float32)

    # single activation input slab: [token_id | mask | g0 | g1 | 0...]
    act = jnp.zeros((BS, PACK_W), jnp.float32)
    act = act.at[:, 0].set(q_tokens.reshape(BS).astype(jnp.float32))
    act = act.at[:, 1].set(q_masks.reshape(BS).astype(jnp.float32))
    act = act.at[:, 2:4].set(g)

    grid_spec = pltpu.PrefetchScalarGridSpec(
        num_scalar_prefetch=0,
        grid=(1,),   # single step; split over B ("parallel") only when compute-bound
        in_specs=[
            pl.BlockSpec((BS, PACK_W), lambda i: (0, 0)),       # activation slab
            pl.BlockSpec((RSLAB, PACK_W), lambda i: (0, 0)),    # bf16 weight slab
        ],
        out_specs=pl.BlockSpec((BS, PACK_W), lambda i: (0, 0)),
    )

    packed = pl.pallas_call(
        _rl_fused_kernel,
        grid_spec=grid_spec,
        out_shape=jax.ShapeDtypeStruct((BS, PACK_W), jnp.float32),
        compiler_params=pltpu.CompilerParams(
            dimension_semantics=("arbitrary",)),
    )(act, wslab)

    sparse_repr = packed[:, OFF_SPARSE:OFF_SPARSE + H].reshape(B, S, H)
    policy_logits = packed[:, OFF_LOGITS:OFF_LOGITS + 2].reshape(B, S, 2)
    log_probs = packed[:, OFF_LOGP:OFF_LOGP + 2].reshape(B, S, 2)
    policy = packed[:, OFF_POLICY:OFF_POLICY + 2].reshape(B, S, 2)
    value = packed[:, OFF_VALUE:OFF_VALUE + 1].reshape(B, S)[:, :1]   # (B, 1)

    return {
        "sparse_repr": sparse_repr,
        "policy_logits": policy_logits,
        "log_probs": log_probs,
        "value": value,
        "policy": policy,
    }


# --------------------------- deterministic init ------------------------------
def init_params(key):
    ks = jax.random.split(key, 12)
    s, sb = 0.1, 0.05
    return {
        "embedding": jax.random.normal(ks[0], (VOCAB, E), jnp.float32) * s,
        "w_enc": jax.random.normal(ks[1], (E, H), jnp.float32) * s,
        "b_enc": jax.random.normal(ks[7], (H,), jnp.float32) * sb,
        "w_rep": jax.random.normal(ks[2], (H, H), jnp.float32) * s,
        "b_rep": jax.random.normal(ks[8], (H,), jnp.float32) * sb,
        "p_w1": jax.random.normal(ks[3], (H, H), jnp.float32) * s,
        "p_b1": jax.random.normal(ks[9], (H,), jnp.float32) * sb,
        "p_w2": jax.random.normal(ks[4], (H, 2), jnp.float32) * s,
        "p_b2": jax.random.normal(ks[10], (2,), jnp.float32) * sb,
        "v_w1": jax.random.normal(ks[5], (H, H), jnp.float32) * s,
        "v_b1": jax.random.normal(ks[11], (H,), jnp.float32) * sb,
        "v_w2": jax.random.normal(ks[6], (H, 1), jnp.float32) * s,
        "v_b2": jnp.zeros((1,), jnp.float32),
    }


def pack_param_slabs(p):
    """Pack all 13 parameter tensors into ONE (256, 128) bf16 weight slab.

    Row bands (every matmul RHS starts at a multiple-of-16 row, lane 0):
      [  0,  80): band A = [embedding @ w_enc ; b_enc ; 0]            K=80 -> N=48
      [ 80, 128): band B = [[w_rep|p_w1] ; [b_rep|p_b1|carry-1] ; 0]  K=48 -> N=80
      [128, 208): band C = [v_w1 ; 0 ; [v_b1|carry-1] ; 0]            K=80 -> N=48
      [208, 256): band D = [[p_w2|v_w2] ; [p_b2|v_b2] ; 0]            K=48 -> N=8
    Biases ride as extra input-feature rows; the matching "1" LHS features are
    generated for free in the kernel (iota one-hot / carry-one output lanes).
    """
    w = jnp.zeros((RSLAB, PACK_W), jnp.float32)
    # band A: fused embedding lookup + encoder projection (exact fold in f32)
    w = w.at[0:VOCAB, 0:H].set(p["embedding"] @ p["w_enc"])
    w = w.at[VOCAB, 0:H].set(p["b_enc"])
    # band B
    w = w.at[RB:RB + H, 0:H].set(p["w_rep"])
    w = w.at[RB:RB + H, H:2 * H].set(p["p_w1"])
    w = w.at[RB + H, 0:H].set(p["b_rep"])
    w = w.at[RB + H, H:2 * H].set(p["p_b1"])
    w = w.at[RB + H, 2 * H].set(1.0)        # carry-one -> rp[:, 64] == 1
    # band C
    w = w.at[RC:RC + H, 0:H].set(p["v_w1"])
    w = w.at[RC + 2 * H, 0:H].set(p["v_b1"])
    w = w.at[RC + 2 * H, H].set(1.0)        # carry-one -> vh_aug[:, 32] == 1
    # band D (fused heads)
    w = w.at[RD:RD + H, 0:2].set(p["p_w2"])
    w = w.at[RD:RD + H, 2:3].set(p["v_w2"])
    w = w.at[RD + H, 0:2].set(p["p_b2"])
    w = w.at[RD + H, 2].set(p["v_b2"][0])
    return w.astype(jnp.bfloat16)


if __name__ == "__main__":
    root = jax.random.PRNGKey(0)
    k_params, k_tokens, k_gumbel = jax.random.split(root, 3)

    params = init_params(k_params)
    wslab = pack_param_slabs(params)

    q_tokens = jax.random.randint(k_tokens, (B, S), 0, VOCAB, dtype=jnp.int32)
    q_masks = jnp.ones((B, S), jnp.float32)

    out = sparse_retrieval_rl_forward(q_tokens, q_masks, wslab, k_gumbel,
                                      temperature=1.0)
    jax.block_until_ready(out)

    # --- structural checks ---
    assert out["sparse_repr"].shape == (B, S, H)
    assert out["policy_logits"].shape == (B, S, 2)
    assert out["log_probs"].shape == (B, S, 2)
    assert out["value"].shape == (B, 1)
    assert out["policy"].shape == (B, S, 2)
    assert bool(jnp.all(jnp.abs(out["policy"].sum(-1) - 1.0) < 1e-6))

    # --- numeric check vs a pure-JAX f32 reference of the same stub model ---
    emb = params["embedding"][q_tokens]                                 # (B,S,E)
    mask = q_masks[..., None]
    h = jnp.tanh(emb @ params["w_enc"] + params["b_enc"]) * mask
    rep = jax.nn.relu(h @ params["w_rep"] + params["b_rep"])
    pooled = rep.max(axis=1)
    ph = jax.nn.relu(h @ params["p_w1"] + params["p_b1"])
    logits_ref = ph @ params["p_w2"] + params["p_b2"]
    logp_ref = jax.nn.log_softmax(logits_ref, axis=-1)
    vh = jax.nn.relu(pooled @ params["v_w1"] + params["v_b1"])
    value_ref = vh @ params["v_w2"] + params["v_b2"]
    sparse_ref = pooled[:, None, :] * out["policy"][..., 1:]            # same sampled action

    tol = dict(atol=5e-2, rtol=5e-2)   # bf16 matmul operands, f32 accumulation
    assert bool(jnp.allclose(out["policy_logits"], logits_ref, **tol))
    assert bool(jnp.allclose(out["log_probs"], logp_ref, **tol))
    assert bool(jnp.allclose(out["value"], value_ref, **tol))
    assert bool(jnp.allclose(out["sparse_repr"], sparse_ref, **tol))

    print("KERNEL_OK")
</pallas_src>

<mosaic_0001>
module attributes {stable_mosaic.version = 11 : i64} {
  func.func @_rl_fused_kernel(%arg0: i32, %arg1: memref<16x128xf32, #tpu.memory_space<vmem>>, %arg2: memref<256x128xbf16, #tpu.memory_space<vmem>>, %arg3: memref<16x128xf32, #tpu.memory_space<vmem>>) attributes {dimension_semantics = [#tpu.dimension_semantics<arbitrary>], iteration_bounds = array<i64: 1>, scalar_prefetch = 0 : i64, scratch_operands = 0 : i64, tpu.core_type = #tpu.core_type<tc>, window_params = [{pipeline_mode = #tpu.pipeline_mode<synchronous>, transform_indices = @transform_0, window_bounds = array<i64: 16, 128>}, {pipeline_mode = #tpu.pipeline_mode<synchronous>, transform_indices = @transform_1, window_bounds = array<i64: 256, 128>}, {pipeline_mode = #tpu.pipeline_mode<synchronous>, transform_indices = @transform_2, window_bounds = array<i64: 16, 128>}]} {
    %c0 = arith.constant 0 : index
    %c0_0 = arith.constant 0 : index
    %0 = vector.load %arg1[%c0, %c0_0] : memref<16x128xf32, #tpu.memory_space<vmem>>, vector<16x1xf32>
    %c0_1 = arith.constant 0 : index
    %c1 = arith.constant 1 : index
    %1 = vector.load %arg1[%c0_1, %c1] : memref<16x128xf32, #tpu.memory_space<vmem>>, vector<16x1xf32>
    %c0_2 = arith.constant 0 : index
    %c2 = arith.constant 2 : index
    %2 = vector.load %arg1[%c0_2, %c2] : memref<16x128xf32, #tpu.memory_space<vmem>>, vector<16x2xf32>
    %c0_3 = arith.constant 0 : index
    %c0_4 = arith.constant 0 : index
    %3 = vector.load %arg2[%c0_3, %c0_4] : memref<256x128xbf16, #tpu.memory_space<vmem>>, vector<80x48xbf16>
    %c80 = arith.constant 80 : index
    %c0_5 = arith.constant 0 : index
    %4 = vector.load %arg2[%c80, %c0_5] : memref<256x128xbf16, #tpu.memory_space<vmem>>, vector<48x80xbf16>
    %c128 = arith.constant 128 : index
    %c0_6 = arith.constant 0 : index
    %5 = vector.load %arg2[%c128, %c0_6] : memref<256x128xbf16, #tpu.memory_space<vmem>>, vector<80x48xbf16>
    %c208 = arith.constant 208 : index
    %c0_7 = arith.constant 0 : index
    %6 = vector.load %arg2[%c208, %c0_7] : memref<256x128xbf16, #tpu.memory_space<vmem>>, vector<48x8xbf16>
    %7 = tpu.iota {dimensions = array<i32: 1>} : vector<16x80xi32>
    %8 = arith.sitofp %7 : vector<16x80xi32> to vector<16x80xf32>
    %9 = vector.broadcast %0 : vector<16x1xf32> to vector<16x80xf32>
    %10 = arith.cmpf oeq, %8, %9 : vector<16x80xf32>
    %cst = arith.constant 6.400000e+01 : f32
    %11 = vector.broadcast %cst : f32 to vector<16x80xf32>
    %12 = arith.cmpf oeq, %8, %11 : vector<16x80xf32>
    %13 = arith.ori %10, %12 : vector<16x80xi1>
    %cst_8 = arith.constant 1.000000e+00 : f32
    %cst_9 = arith.constant 0.000000e+00 : f32
    %14 = vector.broadcast %cst_8 : f32 to vector<16x80xf32>
    %15 = vector.broadcast %cst_9 : f32 to vector<16x80xf32>
    %16 = arith.select %13, %14, %15 : vector<16x80xi1>, vector<16x80xf32>
    %17 = arith.truncf %16 : vector<16x80xf32> to vector<16x80xbf16>
    %cst_10 = arith.constant dense<0.000000e+00> : vector<16x48xf32>
    %18 = tpu.matmul %17, %3, %cst_10 {dimension_numbers = #tpu.dot_dimension_numbers<[1], [0], [0], [1], [0, 0, 1, 1], [], []>} : vector<16x80xbf16>, vector<80x48xbf16>, vector<16x48xf32> -> vector<16x48xf32>
    %19 = tpu.iota {dimensions = array<i32: 1>} : vector<16x48xi32>
    %c32_i32 = arith.constant 32 : i32
    %20 = vector.broadcast %c32_i32 : i32 to vector<16x48xi32>
    %21 = arith.cmpi eq, %19, %20 : vector<16x48xi32>
    %22 = math.tanh %18 : vector<16x48xf32>
    %23 = vector.broadcast %1 : vector<16x1xf32> to vector<16x48xf32>
    %24 = arith.mulf %22, %23 : vector<16x48xf32>
    %cst_11 = arith.constant 1.000000e+00 : f32
    %25 = vector.broadcast %cst_11 : f32 to vector<16x48xf32>
    %26 = arith.select %21, %25, %24 : vector<16x48xi1>, vector<16x48xf32>
    %27 = arith.truncf %26 : vector<16x48xf32> to vector<16x48xbf16>
    %cst_12 = arith.constant dense<0.000000e+00> : vector<16x80xf32>
    %28 = tpu.matmul %27, %4, %cst_12 {dimension_numbers = #tpu.dot_dimension_numbers<[1], [0], [0], [1], [0, 0, 1, 1], [], []>} : vector<16x48xbf16>, vector<48x80xbf16>, vector<16x80xf32> -> vector<16x80xf32>
    %cst_13 = arith.constant 0.000000e+00 : f32
    %29 = vector.broadcast %cst_13 : f32 to vector<16x80xf32>
    %30 = arith.maximumf %28, %29 : vector<16x80xf32>
    %31 = vector.extract_strided_slice %30 {offsets = [0, 32], sizes = [16, 48], strides = [1, 1]} : vector<16x80xf32> to vector<16x48xf32>
    %32 = vector.shape_cast %30 : vector<16x80xf32> to vector<2x8x80xf32>
    %cst_14 = arith.constant dense<0xFF800000> : vector<2x80xf32>
    %33 = vector.multi_reduction <maximumf>, %32, %cst_14 [1] : vector<2x8x80xf32> to vector<2x80xf32>
    %34 = arith.truncf %33 : vector<2x80xf32> to vector<2x80xbf16>
    %cst_15 = arith.constant dense<0.000000e+00> : vector<2x48xf32>
    %35 = tpu.matmul %34, %5, %cst_15 {dimension_numbers = #tpu.dot_dimension_numbers<[1], [0], [0], [1], [0, 0, 1, 1], [], []>} : vector<2x80xbf16>, vector<80x48xbf16>, vector<2x48xf32> -> vector<2x48xf32>
    %cst_16 = arith.constant 0.000000e+00 : f32
    %36 = vector.broadcast %cst_16 : f32 to vector<2x48xf32>
    %37 = arith.maximumf %35, %36 : vector<2x48xf32>
    %38 = tpu.concatenate %31, %37 in 0 : vector<16x48xf32>, vector<2x48xf32> -> vector<18x48xf32>
    %39 = arith.truncf %38 : vector<18x48xf32> to vector<18x48xbf16>
    %cst_17 = arith.constant dense<0.000000e+00> : vector<18x8xf32>
    %40 = tpu.matmul %39, %6, %cst_17 {dimension_numbers = #tpu.dot_dimension_numbers<[1], [0], [0], [1], [0, 0, 1, 1], [], []>} : vector<18x48xbf16>, vector<48x8xbf16>, vector<18x8xf32> -> vector<18x8xf32>
    %41 = vector.extract_strided_slice %40 {offsets = [0, 0], sizes = [16, 2], strides = [1, 1]} : vector<18x8xf32> to vector<16x2xf32>
    %42 = vector.extract_strided_slice %40 {offsets = [16, 2], sizes = [2, 1], strides = [1, 1]} : vector<18x8xf32> to vector<2x1xf32>
    %cst_18 = arith.constant dense<0xFF800000> : vector<16xf32>
    %43 = vector.multi_reduction <maximumf>, %41, %cst_18 [1] : vector<16x2xf32> to vector<16xf32>
    %44 = vector.shape_cast %43 : vector<16xf32> to vector<16x1xf32>
    %45 = vector.broadcast %44 : vector<16x1xf32> to vector<16x2xf32>
    %46 = arith.subf %41, %45 : vector<16x2xf32>
    %47 = math.exp %46 : vector<16x2xf32>
    %cst_19 = arith.constant dense<0.000000e+00> : vector<16xf32>
    %48 = vector.multi_reduction <add>, %47, %cst_19 [1] : vector<16x2xf32> to vector<16xf32>
    %49 = vector.shape_cast %48 : vector<16xf32> to vector<16x1xf32>
    %50 = math.log %49 : vector<16x1xf32>
    %51 = vector.broadcast %50 : vector<16x1xf32> to vector<16x2xf32>
    %52 = arith.subf %46, %51 : vector<16x2xf32>
    %53 = arith.addf %41, %2 : vector<16x2xf32>
    %54 = vector.extract_strided_slice %53 {offsets = [0, 1], sizes = [16, 1], strides = [1, 1]} : vector<16x2xf32> to vector<16x1xf32>
    %55 = vector.extract_strided_slice %53 {offsets = [0, 0], sizes = [16, 1], strides = [1, 1]} : vector<16x2xf32> to vector<16x1xf32>
    %56 = arith.cmpf ogt, %54, %55 : vector<16x1xf32>
    %57 = arith.extui %56 : vector<16x1xi1> to vector<16x1xi32>
    %58 = arith.sitofp %57 : vector<16x1xi32> to vector<16x1xf32>
    %59 = tpu.iota {dimensions = array<i32: 1>} : vector<16x2xi32>
    %c1_i32 = arith.constant 1 : i32
    %60 = vector.broadcast %c1_i32 : i32 to vector<16x2xi32>
    %61 = arith.cmpi eq, %59, %60 : vector<16x2xi32>
    %cst_20 = arith.constant 1.000000e+00 : f32
    %62 = vector.broadcast %cst_20 : f32 to vector<16x1xf32>
    %63 = arith.subf %62, %58 : vector<16x1xf32>
    %64 = vector.shape_cast %58 : vector<16x1xf32> to vector<16x1xf32>
    %65 = vector.broadcast %64 : vector<16x1xf32> to vector<16x2xf32>
    %66 = vector.shape_cast %63 : vector<16x1xf32> to vector<16x1xf32>
    %67 = vector.broadcast %66 : vector<16x1xf32> to vector<16x2xf32>
    %68 = arith.select %61, %65, %67 : vector<16x2xi1>, vector<16x2xf32>
    %69 = vector.extract_strided_slice %33 {offsets = [0, 0], sizes = [2, 32], strides = [1, 1]} : vector<2x80xf32> to vector<2x32xf32>
    %70 = vector.shape_cast %69 : vector<2x32xf32> to vector<2x1x32xf32>
    %71 = vector.shape_cast %70 : vector<2x1x32xf32> to vector<2x1x32xf32>
    %72 = vector.broadcast %71 : vector<2x1x32xf32> to vector<2x8x32xf32>
    %73 = vector.shape_cast %72 : vector<2x8x32xf32> to vector<16x32xf32>
    %74 = vector.broadcast %58 : vector<16x1xf32> to vector<16x32xf32>
    %75 = arith.mulf %73, %74 : vector<16x32xf32>
    %76 = vector.shape_cast %42 : vector<2x1xf32> to vector<2x1x1xf32>
    %77 = vector.shape_cast %76 : vector<2x1x1xf32> to vector<2x1x1xf32>
    %78 = vector.broadcast %77 : vector<2x1x1xf32> to vector<2x8x1xf32>
    %79 = vector.shape_cast %78 : vector<2x8x1xf32> to vector<16x1xf32>
    %cst_21 = arith.constant 0.000000e+00 : f32
    %80 = vector.broadcast %cst_21 : f32 to vector<16x128xf32>
    %c0_22 = arith.constant 0 : index
    %c0_23 = arith.constant 0 : index
    %81 = vector.load %arg3[%c0_22, %c0_23] : memref<16x128xf32, #tpu.memory_space<vmem>>, vector<16x128xf32>
    tpu.vector_store %arg3[%c0_22, %c0_23], %80 {strides = array<i32>} : memref<16x128xf32, #tpu.memory_space<vmem>>, vector<16x128xf32>,
    %c0_24 = arith.constant 0 : index
    %c0_25 = arith.constant 0 : index
    %82 = vector.load %arg3[%c0_24, %c0_25] : memref<16x128xf32, #tpu.memory_space<vmem>>, vector<16x32xf32>
    tpu.vector_store %arg3[%c0_24, %c0_25], %75 {strides = array<i32>} : memref<16x128xf32, #tpu.memory_space<vmem>>, vector<16x32xf32>,
    %c0_26 = arith.constant 0 : index
    %c32 = arith.constant 32 : index
    %83 = vector.load %arg3[%c0_26, %c32] : memref<16x128xf32, #tpu.memory_space<vmem>>, vector<16x2xf32>
    tpu.vector_store %arg3[%c0_26, %c32], %41 {strides = array<i32>} : memref<16x128xf32, #tpu.memory_space<vmem>>, vector<16x2xf32>,
    %c0_27 = arith.constant 0 : index
    %c34 = arith.constant 34 : index
    %84 = vector.load %arg3[%c0_27, %c34] : memref<16x128xf32, #tpu.memory_space<vmem>>, vector<16x2xf32>
    tpu.vector_store %arg3[%c0_27, %c34], %52 {strides = array<i32>} : memref<16x128xf32, #tpu.memory_space<vmem>>, vector<16x2xf32>,
    %c0_28 = arith.constant 0 : index
    %c36 = arith.constant 36 : index
    %85 = vector.load %arg3[%c0_28, %c36] : memref<16x128xf32, #tpu.memory_space<vmem>>, vector<16x2xf32>
    tpu.vector_store %arg3[%c0_28, %c36], %68 {strides = array<i32>} : memref<16x128xf32, #tpu.memory_space<vmem>>, vector<16x2xf32>,
    %c0_29 = arith.constant 0 : index
    %c38 = arith.constant 38 : index
    %86 = vector.load %arg3[%c0_29, %c38] : memref<16x128xf32, #tpu.memory_space<vmem>>, vector<16x1xf32>
    tpu.vector_store %arg3[%c0_29, %c38], %79 {strides = array<i32>} : memref<16x128xf32, #tpu.memory_space<vmem>>, vector<16x1xf32>,
    return
  }
  func.func @transform_0(%arg0: i32) -> (i32, i32) {
    %c0_i32 = arith.constant 0 : i32
    %c0_i32_0 = arith.constant 0 : i32
    %c0_i32_1 = arith.constant 0 : i32
    return %c0_i32, %c0_i32_0 : i32, i32
  }
  func.func @transform_1(%arg0: i32) -> (i32, i32) {
    %c0_i32 = arith.constant 0 : i32
    %c0_i32_0 = arith.constant 0 : i32
    %c0_i32_1 = arith.constant 0 : i32
    return %c0_i32, %c0_i32_0 : i32, i32
  }
  func.func @transform_2(%arg0: i32) -> (i32, i32) {
    %c0_i32 = arith.constant 0 : i32
    %c0_i32_0 = arith.constant 0 : i32
    %c0_i32_1 = arith.constant 0 : i32
    return %c0_i32, %c0_i32_0 : i32, i32
  }
}

</mosaic_0001>

<llo_original>
// kernel: sparse_retrieval_rl_forward.1
$region0: #{sparse_retrieval_rl_forward.1}
  #allocation0 [shape = 'u32[]', space=smem, size = 0x4, offset = 0x4, fixed_abs, tag = 'smem constant byte address 0x4 - core index']
  #allocation1 [shape = 'u32[144,128]{1,0:T(1,128)}', space=vmem, size = 0x12000, scoped, tag = 'internal scratch']
  %s0 = inlined_call_operand.vmem [shape: f32[16,128], index: 0, kind: input, shape index: {}]
  %s1 = inlined_call_operand.vmem [shape: bf16[256,128], index: 1, kind: input, shape index: {}]
  %s2 = inlined_call_operand.vmem [shape: f32[16,128], index: 2, kind: output, shape index: {}]
  %s3 = sld [smem:[#allocation0]]
  $region18: #{sparse_retrieval_rl_forward.1} parent=0
    _
  %s5 = ssub.s32 1, %s3
  %s6 = scalar_select 0, %s5, %s3
  // Predicated region
  $region2: #{sparse_retrieval_rl_forward.1} parent=0 // pred_check
    _
  $region3: #{sparse_retrieval_rl_forward.1} parent=0 // pred_check_branch
    %8 = sbr.rel (0) target = $region5
  $region4: #{sparse_retrieval_rl_forward.1} parent=0 // pred_region
    _
  $region5: #{sparse_retrieval_rl_forward.1} parent=0 // pred_fallthru
    _
  // Predicated region
  $region6: #{sparse_retrieval_rl_forward.1} parent=0 // pred_check
    _
  $region7: #{sparse_retrieval_rl_forward.1} parent=0 // pred_check_branch
    %10 = sbr.rel (0) target = $region9
  $region8: #{sparse_retrieval_rl_forward.1} parent=0 // pred_region
    _
  $region9: #{sparse_retrieval_rl_forward.1} parent=0 // pred_fallthru
    _
  %v12 = vld [vmem:[%s0] sm:$0xff]
  %v13 = vld [vmem:[%s0 + $0x8] sm:$0xff]
  %v14 = vld [vmem:[%s1] sm:$0xf]
  %v15 = vld [vmem:[%s1 + $0x4] sm:$0xf]
  %v16 = vld [vmem:[%s1 + $0x8] sm:$0xf]
  %v17 = vld [vmem:[%s1 + $0xc] sm:$0xf]
  %v18 = vld [vmem:[%s1 + $0x10] sm:$0xf]
  %v19 = vld [vmem:[%s1 + $0x14] sm:$0xf]
  %v20 = vld [vmem:[%s1 + $0x18] sm:$0xf]
  %v21 = vld [vmem:[%s1 + $0x1c] sm:$0xf]
  %v22 = vld [vmem:[%s1 + $0x20] sm:$0xf]
  %v23 = vld [vmem:[%s1 + $0x24] sm:$0xf]
  %v24 = vld [vmem:[%s1 + $0x28] sm:$0xf]
  %v25 = vld [vmem:[%s1 + $0x2c] sm:$0xf]
  %v26 = vld [vmem:[%s1 + $0x30] sm:$0xf]
  %v27 = vld [vmem:[%s1 + $0x34] sm:$0xf]
  %v28 = vld [vmem:[%s1 + $0x38] sm:$0xf]
  %v29 = vld [vmem:[%s1 + $0x3c] sm:$0xf]
  %v30 = vld [vmem:[%s1 + $0x40] sm:$0xf]
  %v31 = vld [vmem:[%s1 + $0x44] sm:$0xf]
  %v32 = vld [vmem:[%s1 + $0x48] sm:$0xf]
  %v33 = vld [vmem:[%s1 + $0x4c] sm:$0xf]
  %v34 = vld [vmem:[%s1 + $0x50] sm:$0xf]
  %v35 = vld [vmem:[%s1 + $0x54] sm:$0xf]
  %v36 = vld [vmem:[%s1 + $0x58] sm:$0xf]
  %v37 = vld [vmem:[%s1 + $0x5c] sm:$0xf]
  %v38 = vld [vmem:[%s1 + $0x60] sm:$0xf]
  %v39 = vld [vmem:[%s1 + $0x64] sm:$0xf]
  %v40 = vld [vmem:[%s1 + $0x68] sm:$0xf]
  %v41 = vld [vmem:[%s1 + $0x6c] sm:$0xf]
  %v42 = vld [vmem:[%s1 + $0x70] sm:$0xf]
  %v43 = vld [vmem:[%s1 + $0x74] sm:$0xf]
  %v44 = vld [vmem:[%s1 + $0x78] sm:$0xf]
  %v45 = vld [vmem:[%s1 + $0x7c] sm:$0xf]
  %v46 = vlaneseq
  %v47 = vand.u32 %v46, 127
  %v48 = vcvt.s32.f32 %v47
  %50 = vset.pattern.permute.xlu0 0
  %51 = vperm.xlu0 %50, %v12
  %v52 = vpop.permute.xlu0 %51
  %55 = vset.pattern.permute.xlu0 0
  %56 = vperm.xlu0 %55, %v13
  %v57 = vpop.permute.xlu0 %56
  %vm59 = vcmp.eq.f32.partialorder %v48, %v52
  %vm60 = vcmp.eq.f32.partialorder %v48, %v57
  %vm61 = vcmp.eq.f32.partialorder %v48, 64.0
  %vm62 = vmor %vm59, %vm61
  %vm63 = vmor %vm60, %vm61
  %v64 = vsel %vm62, 1.0, 0.0
  %v65 = vsel %vm63, 1.0, 0.0
  %v66 = vpack.c.bf16 %v65, %v64
  %v77 = vunpack.c.l.b16 %v14
  %v78 = vunpack.c.l.b16 %v15
  %v79 = vunpack.c.l.b16 %v16
  %v80 = vunpack.c.l.b16 %v17
  %v81 = vunpack.c.l.b16 %v18
  %v82 = vunpack.c.l.b16 %v19
  %v83 = vunpack.c.l.b16 %v20
  %v84 = vunpack.c.l.b16 %v21
  %v85 = vunpack.c.l.b16 %v22
  %v86 = vunpack.c.l.b16 %v23
  %v87 = vpack.c.b16 %v78, %v77
  %v88 = vpack.c.b16 %v80, %v79
  %v89 = vpack.c.b16 %v82, %v81
  %v90 = vpack.c.b16 %v84, %v83
  %v91 = vpack.c.b16 %v86, %v85
  %vm97 = vcmask 654336
  %v99 = vsel %vm97, %v66, 0
  %101 = vmatprep.subr.bf16.mxu0 0
  %102 = vmatpush1.bf16.msra.mxu0 0
  %103 = vmatprep.subr.bf16.mxu0 0
  %104 = vmatpush1.bf16.msra.mxu0 0
  %105 = vmatprep.subr.bf16.mxu0 0
  %106 = vmatpush1.bf16.msra.mxu0 0
  %107 = vmatprep.subr.bf16.mxu0 0
  %108 = vmatpush1.bf16.msra.mxu0 %v91
  %109 = vmatprep.subr.bf16.mxu0 0
  %110 = vmatpush1.bf16.msra.mxu0 %v90
  %111 = vmatprep.subr.bf16.mxu0 0
  %112 = vmatpush1.bf16.msra.mxu0 %v89
  %113 = vmatprep.subr.bf16.mxu0 0
  %114 = vmatpush1.bf16.msra.mxu0 %v88
  %115 = vmatprep.subr.bf16.mxu0 0
  %116 = vmatpush1.bf16.msra.mxu0 %v87
  %117 = vmatprep.subr.bf16.mxu0 0
  %118 = vmatpush2.bf16.msra.mxu0 0
  %119 = vmatprep.subr.bf16.mxu0 0
  %120 = vmatpush2.bf16.msra.mxu0 0
  %121 = vmatprep.subr.bf16.mxu0 0
  %122 = vmatpush2.bf16.msra.mxu0 0
  %123 = vmatprep.subr.bf16.mxu0 0
  %124 = vmatpush2.bf16.msra.mxu0 0
  %125 = vmatprep.subr.bf16.mxu0 0
  %126 = vmatpush2.bf16.msra.mxu0 0
  %127 = vmatprep.subr.bf16.mxu0 0
  %128 = vmatpush2.bf16.msra.mxu0 0
  %129 = vmatprep.subr.bf16.mxu0 0
  %130 = vmatpush2.bf16.msra.mxu0 0
  %131 = vmatprep.subr.bf16.mxu0 0
  %132 = vmatpush2.bf16.msra.mxu0 0
  %133 = vmatprep.mubr.bf16.mxu0 0
  %134 = vmatmul.mubr.bf16.gmra.mxu0 %v99
  %v135 = vpop.f32.mrf.mxu0
  %v136 = vadd.f32 0.0, %v135
  %v137 = vpop.f32.mrf.mxu0
  %v138 = vpop.f32.mrf.mxu0
  %v139 = vadd.f32 0.0, %v138
  %v140 = vpop.f32.mrf.mxu0
  %141 = vdwg.mxu0
  %vm142 = vcmp.eq.s32.totalorder %v47, 32
  %v143 = vtanh.pop %v136
  %v144 = vtanh.pop %v139
  %145 = vset.pattern.permute.xlu0 1
  %146 = vperm.xlu0 %145, %v12
  %v147 = vpop.permute.xlu0 %146
  %149 = vset.pattern.permute.xlu0 1
  %150 = vperm.xlu0 %149, %v13
  %v151 = vpop.permute.xlu0 %150
  %v153 = vmul.f32 %v143, %v147
  %v154 = vmul.f32 %v144, %v151
  %v155 = vsel %vm142, 1.0, %v153
  %v156 = vsel %vm142, 1.0, %v154
  %v157 = vpack.c.bf16 %v156, %v155
  %v164 = vunpack.c.l.b16 %v24
  %v165 = vunpack.c.l.b16 %v25
  %v166 = vunpack.c.l.b16 %v26
  %v167 = vunpack.c.l.b16 %v27
  %v168 = vunpack.c.l.b16 %v28
  %v169 = vunpack.c.l.b16 %v29
  %v170 = vpack.c.b16 %v165, %v164
  %v171 = vpack.c.b16 %v167, %v166
  %v172 = vpack.c.b16 %v169, %v168
  %vm176 = vcmask 392192
  %v178 = vsel %vm176, %v157, 0
  %180 = vmatprep.subr.bf16.mxu0 0
  %181 = vmatpush1.bf16.msra.mxu0 0
  %182 = vmatprep.subr.bf16.mxu0 0
  %183 = vmatpush1.bf16.msra.mxu0 0
  %184 = vmatprep.subr.bf16.mxu0 0
  %185 = vmatpush1.bf16.msra.mxu0 0
  %186 = vmatprep.subr.bf16.mxu0 0
  %187 = vmatpush1.bf16.msra.mxu0 0
  %188 = vmatprep.subr.bf16.mxu0 0
  %189 = vmatpush1.bf16.msra.mxu0 0
  %190 = vmatprep.subr.bf16.mxu0 0
  %191 = vmatpush1.bf16.msra.mxu0 %v172
  %192 = vmatprep.subr.bf16.mxu0 0
  %193 = vmatpush1.bf16.msra.mxu0 %v171
  %194 = vmatprep.subr.bf16.mxu0 0
  %195 = vmatpush1.bf16.msra.mxu0 %v170
  %196 = vmatprep.subr.bf16.mxu0 0
  %197 = vmatpush2.bf16.msra.mxu0 0
  %198 = vmatprep.subr.bf16.mxu0 0
  %199 = vmatpush2.bf16.msra.mxu0 0
  %200 = vmatprep.subr.bf16.mxu0 0
  %201 = vmatpush2.bf16.msra.mxu0 0
  %202 = vmatprep.subr.bf16.mxu0 0
  %203 = vmatpush2.bf16.msra.mxu0 0
  %204 = vmatprep.subr.bf16.mxu0 0
  %205 = vmatpush2.bf16.msra.mxu0 0
  %206 = vmatprep.subr.bf16.mxu0 0
  %207 = vmatpush2.bf16.msra.mxu0 0
  %208 = vmatprep.subr.bf16.mxu0 0
  %209 = vmatpush2.bf16.msra.mxu0 0
  %210 = vmatprep.subr.bf16.mxu0 0
  %211 = vmatpush2.bf16.msra.mxu0 0
  %212 = vmatprep.mubr.bf16.mxu0 0
  %213 = vmatmul.mubr.bf16.gmra.mxu0 %v178
  %v214 = vpop.f32.mrf.mxu0
  %v215 = vadd.f32 0.0, %v214
  %v216 = vpop.f32.mrf.mxu0
  %v217 = vpop.f32.mrf.mxu0
  %v218 = vadd.f32 0.0, %v217
  %v219 = vpop.f32.mrf.mxu0
  %220 = vdwg.mxu0
  %v221 = vmax.f32 %v215, 0.0
  %v222 = vmax.f32 %v218, 0.0
  %v223 = vsel %vm97, %v221, -inf
  %v224 = vrot.slane %v223, 4
  %v225 = vmax.f32 %v223, %v224
  %v226 = vrot.slane %v225, 2
  %v227 = vmax.f32 %v225, %v226
  %v228 = vrot.slane %v227, 1
  %v229 = vmax.f32 %v227, %v228
  %v230 = vsel %vm97, %v222, -inf
  %v231 = vrot.slane %v230, 4
  %v232 = vmax.f32 %v230, %v231
  %v233 = vrot.slane %v232, 2
  %v234 = vmax.f32 %v232, %v233
  %v235 = vrot.slane %v234, 1
  %v236 = vmax.f32 %v234, %v235
  %v237 = vpack.c.bf16 %v229, %v229
  %v238 = vpack.c.bf16 %v236, %v236
  %v241 = vunpack.c.l.b16 %v237
  %v242 = vunpack.c.l.b16 %v238
  %vm243 = vcmask 1041409
  %v244 = vsel %vm243, %v242, %v241
  %v245 = vpack.c.b16 %v244, %v244
  %v256 = vunpack.c.l.b16 %v30
  %v257 = vunpack.c.l.b16 %v31
  %v258 = vunpack.c.l.b16 %v32
  %v259 = vunpack.c.l.b16 %v33
  %v260 = vunpack.c.l.b16 %v34
  %v261 = vunpack.c.l.b16 %v35
  %v262 = vunpack.c.l.b16 %v36
  %v263 = vunpack.c.l.b16 %v37
  %v264 = vunpack.c.l.b16 %v38
  %v265 = vunpack.c.l.b16 %v39
  %v266 = vpack.c.b16 %v257, %v256
  %v267 = vpack.c.b16 %v259, %v258
  %v268 = vpack.c.b16 %v261, %v260
  %v269 = vpack.c.b16 %v263, %v262
  %v270 = vpack.c.b16 %v265, %v264
  %v277 = vsel %vm97, %v245, 0
  %279 = vmatprep.subr.bf16.mxu0 0
  %280 = vmatpush1.bf16.msra.mxu0 0
  %281 = vmatprep.subr.bf16.mxu0 0
  %282 = vmatpush1.bf16.msra.mxu0 0
  %283 = vmatprep.subr.bf16.mxu0 0
  %284 = vmatpush1.bf16.msra.mxu0 0
  %285 = vmatprep.subr.bf16.mxu0 0
  %286 = vmatpush1.bf16.msra.mxu0 %v270
  %287 = vmatprep.subr.bf16.mxu0 0
  %288 = vmatpush1.bf16.msra.mxu0 %v269
  %289 = vmatprep.subr.bf16.mxu0 0
  %290 = vmatpush1.bf16.msra.mxu0 %v268
  %291 = vmatprep.subr.bf16.mxu0 0
  %292 = vmatpush1.bf16.msra.mxu0 %v267
  %293 = vmatprep.subr.bf16.mxu0 0
  %294 = vmatpush1.bf16.msra.mxu0 %v266
  %295 = vmatprep.subr.bf16.mxu0 0
  %296 = vmatpush2.bf16.msra.mxu0 0
  %297 = vmatprep.subr.bf16.mxu0 0
  %298 = vmatpush2.bf16.msra.mxu0 0
  %299 = vmatprep.subr.bf16.mxu0 0
  %300 = vmatpush2.bf16.msra.mxu0 0
  %301 = vmatprep.subr.bf16.mxu0 0
  %302 = vmatpush2.bf16.msra.mxu0 0
  %303 = vmatprep.subr.bf16.mxu0 0
  %304 = vmatpush2.bf16.msra.mxu0 0
  %305 = vmatprep.subr.bf16.mxu0 0
  %306 = vmatpush2.bf16.msra.mxu0 0
  %307 = vmatprep.subr.bf16.mxu0 0
  %308 = vmatpush2.bf16.msra.mxu0 0
  %309 = vmatprep.subr.bf16.mxu0 0
  %310 = vmatpush2.bf16.msra.mxu0 0
  %311 = vmatprep.mubr.bf16.mxu0 0
  %312 = vmatmul.mubr.bf16.gmra.mxu0 %v277
  %v313 = vpop.f32.mrf.mxu0
  %v314 = vadd.f32 0.0, %v313
  %v315 = vpop.f32.mrf.mxu0
  %v316 = vpop.f32.mrf.mxu0
  %v317 = vpop.f32.mrf.mxu0
  %318 = vdwg.mxu0
  %v319 = vmax.f32 %v314, 0.0
  %321 = vrot.lane.b32.xlu0 %v319, 32
  %v322 = vpop.permute.xlu0 %321
  %v324 = vpack.c.bf16 %v222, %v221
  %v325 = vpack.c.bf16 %v322, %v322
  %328 = vrot.lane.b32.xlu0 %v324, 96
  %v329 = vpop.permute.xlu0 %328
  %330 = vrot.lane.b32.xlu0 %v325, 96
  %v331 = vpop.permute.xlu0 %330
  %v338 = vunpack.c.l.b16 %v40
  %v339 = vunpack.c.l.b16 %v41
  %v340 = vunpack.c.l.b16 %v42
  %v341 = vunpack.c.l.b16 %v43
  %v342 = vunpack.c.l.b16 %v44
  %v343 = vunpack.c.l.b16 %v45
  %v344 = vpack.c.b16 %v339, %v338
  %v345 = vpack.c.b16 %v341, %v340
  %v346 = vpack.c.b16 %v343, %v342
  %v351 = vsel %vm176, %v329, 0
  %v354 = vsel %vm176, %v331, 0
  %356 = vmatprep.subr.bf16.mxu0 0
  %357 = vmatpush1.bf16.msra.mxu0 0
  %358 = vmatprep.subr.bf16.mxu0 0
  %359 = vmatpush1.bf16.msra.mxu0 0
  %360 = vmatprep.subr.bf16.mxu0 0
  %361 = vmatpush1.bf16.msra.mxu0 0
  %362 = vmatprep.subr.bf16.mxu0 0
  %363 = vmatpush1.bf16.msra.mxu0 0
  %364 = vmatprep.subr.bf16.mxu0 0
  %365 = vmatpush1.bf16.msra.mxu0 0
  %366 = vmatprep.subr.bf16.mxu0 0
  %367 = vmatpush1.bf16.msra.mxu0 %v346
  %368 = vmatprep.subr.bf16.mxu0 0
  %369 = vmatpush1.bf16.msra.mxu0 %v345
  %370 = vmatprep.subr.bf16.mxu0 0
  %371 = vmatpush1.bf16.msra.mxu0 %v344
  %372 = vmatprep.subr.bf16.mxu0 0
  %373 = vmatpush2.bf16.msra.mxu0 0
  %374 = vmatprep.subr.bf16.mxu0 0
  %375 = vmatpush2.bf16.msra.mxu0 0
  %376 = vmatprep.subr.bf16.mxu0 0
  %377 = vmatpush2.bf16.msra.mxu0 0
  %378 = vmatprep.subr.bf16.mxu0 0
  %379 = vmatpush2.bf16.msra.mxu0 0
  %380 = vmatprep.subr.bf16.mxu0 0
  %381 = vmatpush2.bf16.msra.mxu0 0
  %382 = vmatprep.subr.bf16.mxu0 0
  %383 = vmatpush2.bf16.msra.mxu0 0
  %384 = vmatprep.subr.bf16.mxu0 0
  %385 = vmatpush2.bf16.msra.mxu0 0
  %386 = vmatprep.subr.bf16.mxu0 0
  %387 = vmatpush2.bf16.msra.mxu0 0
  %388 = vmatprep.mubr.bf16.mxu0 0
  %389 = vmatmul.mubr.bf16.gmra.mxu0 %v351
  %v390 = vpop.f32.mrf.mxu0
  %v391 = vadd.f32 0.0, %v390
  %v392 = vpop.f32.mrf.mxu0
  %v393 = vpop.f32.mrf.mxu0
  %v394 = vadd.f32 0.0, %v393
  %v395 = vpop.f32.mrf.mxu0
  %396 = vmatprep.mubr.bf16.mxu0 0
  %397 = vmatmul.mubr.bf16.gmra.mxu0 %v354
  %v398 = vpop.f32.mrf.mxu0
  %v399 = vadd.f32 0.0, %v398
  %v400 = vpop.f32.mrf.mxu0
  %v401 = vpop.f32.mrf.mxu0
  %v402 = vpop.f32.mrf.mxu0
  %403 = vdwg.mxu0
  %vm404 = vcmask 15360
  %v405 = vsel %vm404, %v391, -inf
  %406 = vmax.xlane.f32.xlu0 %v405
  %v407 = vpop.xlane.xlu0 %406
  %v408 = vsel %vm404, %v394, -inf
  %409 = vmax.xlane.f32.xlu0 %v408
  %v410 = vpop.xlane.xlu0 %409
  %v411 = vsub.f32 %v391, %v407
  %v412 = vsub.f32 %v394, %v410
  %v413 = vmul.f32 %v411, 1.442695
  %v414 = vpow.pop %v413
  %v415 = vmul.f32 %v412, 1.442695
  %v416 = vpow.pop %v415
  %v417 = vsel %vm404, %v414, 0.0
  %418 = vadd.xlane.f32.xlu0 %v417
  %v419 = vpop.xlane.xlu0 %418
  %v420 = vsel %vm404, %v416, 0.0
  %421 = vadd.xlane.f32.xlu0 %v420
  %v422 = vpop.xlane.xlu0 %421
  %v423 = vlog2.pop %v419
  %v424 = vmul.f32 %v423, 0.6931472
  %v425 = vlog2.pop %v422
  %v426 = vmul.f32 %v425, 0.6931472
  %v427 = vsub.f32 %v411, %v424
  %v428 = vsub.f32 %v412, %v426
  %429 = vrot.lane.b32.xlu0 %v12, 126
  %v430 = vpop.permute.xlu0 %429
  %431 = vrot.lane.b32.xlu0 %v13, 126
  %v432 = vpop.permute.xlu0 %431
  %v435 = vadd.f32 %v391, %v430
  %v436 = vadd.f32 %v394, %v432
  %439 = vrot.lane.b32.xlu0 %v435, 1
  %v440 = vpop.permute.xlu0 %439
  %441 = vrot.lane.b32.xlu0 %v436, 1
  %v442 = vpop.permute.xlu0 %441
  %vm445 = vcmp.gt.f32.partialorder %v435, %v440
  %vm446 = vcmp.gt.f32.partialorder %v436, %v442
  %v447 = vsel %vm445, 1, 0
  %v448 = vsel %vm446, 1, 0
  %v449 = vcvt.s32.f32 %v447
  %v450 = vcvt.s32.f32 %v448
  %vm451 = vcmp.eq.s32.totalorder %v47, 1
  %v452 = vsub.f32 1.0, %v449
  %v453 = vsub.f32 1.0, %v450
  %455 = vset.pattern.permute.xlu0 1
  %456 = vperm.xlu0 %455, %v449
  %v457 = vpop.permute.xlu0 %456
  %460 = vset.pattern.permute.xlu0 1
  %461 = vperm.xlu0 %460, %v450
  %v462 = vpop.permute.xlu0 %461
  %465 = vset.pattern.permute.xlu0 1
  %466 = vperm.xlu0 %465, %v452
  %v467 = vpop.permute.xlu0 %466
  %470 = vset.pattern.permute.xlu0 1
  %471 = vperm.xlu0 %470, %v453
  %v472 = vpop.permute.xlu0 %471
  %v474 = vsel %vm451, %v457, %v467
  %v475 = vsel %vm451, %v462, %v472
  %v476 = vmul.f32 %v229, %v457
  %v477 = vmul.f32 %v236, %v462
  %v480 = vunpack.c.l.s4 1966171168
  %v481 = vunpack.c.0.s8 %v480
  %v482 = vlaneseq
  %v483 = vshrl.u32 %v482, 7
  %v484 = vsub.s32 %v481, %v483
  %v485 = vrot.slane %v399, %v484
  %v486 = vcombine.high %v485, %v485
  %v488 = vunpack.c.l.s4 1966171168
  %v489 = vunpack.c.0.s8 %v488
  %v490 = vlaneseq
  %v491 = vshrl.u32 %v490, 7
  %v492 = vsub.s32 %v489, %v491
  %v493 = vrot.slane %v485, %v492
  %v495 = vunpack.c.l.s4 1966171168
  %v496 = vunpack.c.0.s8 %v495
  %v497 = vlaneseq
  %v498 = vshrl.u32 %v497, 7
  %v499 = vsub.s32 %v496, %v498
  %v500 = vrot.slane %v486, %v499
  %v501 = vlaneseq
  %v502 = vshrl.u32 %v501, 7
  %v503 = vsub.s32 0, %v502
  %v504 = vrot.slane %v493, %v503
  %v505 = vlaneseq
  %v506 = vshrl.u32 %v505, 7
  %v507 = vsub.s32 0, %v506
  %v508 = vrot.slane %v500, %v507
  %509 = vst [vmem:[%s2] sm:$0xff] 0.0
  %510 = vst [vmem:[%s2 + $0x8] sm:$0xff] 0.0
  %vm511 = vcmask 261120
  %512 = vst.msk [vmem:[%s2] sm:$0xff] %vm511, %v476
  %513 = vst.msk [vmem:[%s2 + $0x8] sm:$0xff] %vm511, %v477
  %516 = vrot.lane.b32.xlu0 %v391, 32
  %v517 = vpop.permute.xlu0 %516
  %518 = vrot.lane.b32.xlu0 %v394, 32
  %v519 = vpop.permute.xlu0 %518
  %vm522 = vcmask 277760
  %523 = vst.msk [vmem:[%s2] sm:$0xff] %vm522, %v517
  %524 = vst.msk [vmem:[%s2 + $0x8] sm:$0xff] %vm522, %v519
  %527 = vrot.lane.b32.xlu0 %v427, 34
  %v528 = vpop.permute.xlu0 %527
  %529 = vrot.lane.b32.xlu0 %v428, 34
  %v530 = vpop.permute.xlu0 %529
  %vm533 = vcmask 294160
  %534 = vst.msk [vmem:[%s2] sm:$0xff] %vm533, %v528
  %535 = vst.msk [vmem:[%s2 + $0x8] sm:$0xff] %vm533, %v530
  %538 = vrot.lane.b32.xlu0 %v474, 36
  %v539 = vpop.permute.xlu0 %538
  %540 = vrot.lane.b32.xlu0 %v475, 36
  %v541 = vpop.permute.xlu0 %540
  %vm544 = vcmask 310560
  %545 = vst.msk [vmem:[%s2] sm:$0xff] %vm544, %v539
  %546 = vst.msk [vmem:[%s2 + $0x8] sm:$0xff] %vm544, %v541
  %547 = vrot.lane.b32.xlu0 %v504, 36
  %v548 = vpop.permute.xlu0 %547
  %549 = vrot.lane.b32.xlu0 %v508, 36
  %v550 = vpop.permute.xlu0 %549
  %vm553 = vcmask 318768
  %554 = vst.msk [vmem:[%s2] sm:$0xff] %vm553, %v548
  %555 = vst.msk [vmem:[%s2 + $0x8] sm:$0xff] %vm553, %v550
  // Predicated region
  $region10: #{sparse_retrieval_rl_forward.1} parent=0 // pred_check
    _
  $region11: #{sparse_retrieval_rl_forward.1} parent=0 // pred_check_branch
    %557 = sbr.rel (0) target = $region13
  $region12: #{sparse_retrieval_rl_forward.1} parent=0 // pred_region
    _
  $region13: #{sparse_retrieval_rl_forward.1} parent=0 // pred_fallthru
    _
  // Predicated region
  $region14: #{sparse_retrieval_rl_forward.1} parent=0 // pred_check
    _
  $region15: #{sparse_retrieval_rl_forward.1} parent=0 // pred_check_branch
    %559 = sbr.rel (0) target = $region17
  $region16: #{sparse_retrieval_rl_forward.1} parent=0 // pred_region
    _
  $region17: #{sparse_retrieval_rl_forward.1} parent=0 // pred_fallthru
    _

</llo_original>
